<compile_context>
chip_gen: v7x
topology: tpu7x:2x2x1
jax: 0.10.0
libtpu: 0.0.40
codegen_flags: <defaults>
</compile_context>

<pallas_src>
import functools
import numpy as np
import jax
import jax.numpy as jnp
from jax.experimental import pallas as pl
from jax.experimental.pallas import tpu as pltpu


def _round_up(x, m):
    return ((x + m - 1) // m) * m


# ----------------------------- Pallas kernel -----------------------------
def _p2p_loss_kernel(logits_ref, tgt_cls_ref, cls_w_ref,
                     src_pts_ref, tgt_pts_ref, inv_num_ref,
                     loss_ce_ref, loss_pt_ref, *, n_valid):
    # logits arrive in the model's native dtype (e.g. bf16); single in-kernel f32 cast.
    logits = logits_ref[...].astype(jnp.float32)            # [C, Npad]  (queries lane-dense)
    tgt = tgt_cls_ref[...]                                   # [1, Npad] int32
    w = cls_w_ref[...].astype(jnp.float32)                   # [C, 1]

    C, N = logits.shape
    cls_iota = jax.lax.broadcasted_iota(jnp.int32, (C, N), 0)
    col_iota = jax.lax.broadcasted_iota(jnp.int32, (1, N), 1)
    valid = col_iota < n_valid                                # mask out lane padding (static n_valid)
    hit = jnp.logical_and(cls_iota == tgt, valid)             # [C, N] onehot(target) & valid

    # log-sum-exp over the (sublane) class axis
    m = jnp.max(logits, axis=0, keepdims=True)                                    # [1, N]
    lse = m + jnp.log(jnp.sum(jnp.exp(logits - m), axis=0, keepdims=True))        # [1, N]

    # fused weighted-CE reductions:
    #   ce_num = sum_n w[tgt[n]] * (lse[n] - logits[tgt[n], n]) ;  ce_den = sum_n w[tgt[n]]
    sel_w = jnp.where(hit, w, 0.0)                            # [C, N] select, no onehot multiply
    ce_num = jnp.sum(sel_w * (lse - logits))
    ce_den = jnp.sum(sel_w)
    loss_ce_ref[...] = (jnp.full((1, 1), ce_num, jnp.float32) /
                        jnp.full((1, 1), ce_den, jnp.float32))

    # point loss: sum of squared error over matched (zero-padded) coords * (1 / num_points)
    d = src_pts_ref[...].astype(jnp.float32) - tgt_pts_ref[...].astype(jnp.float32)   # [1, P]
    sq = jnp.sum(d * d)
    loss_pt_ref[...] = jnp.full((1, 1), sq, jnp.float32) * inv_num_ref[0, 0]


def _run_loss_kernel(logits_cn, target_classes_1n, class_weight_c1,
                     src_pts_1p, tgt_pts_1p, inv_num_boxes_11, n_valid):
    kernel = functools.partial(_p2p_loss_kernel, n_valid=n_valid)
    loss_ce, loss_pt = pl.pallas_call(
        kernel,
        out_shape=(jax.ShapeDtypeStruct((1, 1), jnp.float32),
                   jax.ShapeDtypeStruct((1, 1), jnp.float32)),
        in_specs=[pl.BlockSpec(memory_space=pltpu.MemorySpace.VMEM)] * 5
                 + [pl.BlockSpec(memory_space=pltpu.MemorySpace.SMEM)],
        out_specs=(pl.BlockSpec(memory_space=pltpu.MemorySpace.VMEM),
                   pl.BlockSpec(memory_space=pltpu.MemorySpace.VMEM)),
    )(logits_cn, target_classes_1n, class_weight_c1,
      src_pts_1p, tgt_pts_1p, inv_num_boxes_11)
    return loss_ce[0, 0], loss_pt[0, 0]


# ----------------------------- glue (mimics the PyTorch module) -----------------------------
def simple_matcher(outputs, targets):
    """Deterministic greedy nearest-point matcher (stands in for the Hungarian matcher)."""
    # TODO(synk): the real Hungarian matcher (scipy linear_sum_assignment) is host-side only.
    pred_points = np.asarray(outputs['pred_points'])
    indices = []
    for b, t in enumerate(targets):
        tp = np.asarray(t['point'])
        used, src = set(), []
        for j in range(tp.shape[0]):
            d = np.sum((pred_points[b] - tp[j]) ** 2, axis=-1)
            for q in np.argsort(d):
                if int(q) not in used:
                    used.add(int(q))
                    src.append(int(q))
                    break
        indices.append((np.asarray(src, dtype=np.int64),
                        np.arange(tp.shape[0], dtype=np.int64)))
    return indices


def p2p_criterion_forward(outputs, targets, matcher, eos_coeff, num_classes):
    pred_logits = outputs['pred_logits']          # [B, Q, C]  (model-native dtype, e.g. bf16)
    pred_points = outputs['pred_points']          # [B, Q, 2]
    B, Q, C = pred_logits.shape
    assert C == num_classes
    BQ = B * Q
    n_pad = max(128, _round_up(BQ, 128))          # static lane-dense query axis
    p_pad = max(128, _round_up(2 * BQ, 128))      # static point-buffer size (no recompiles)

    indices = matcher({'pred_logits': pred_logits, 'pred_points': pred_points}, targets)

    # empty_weight buffer (class on the sublane axis)
    empty_weight = np.ones((num_classes, 1), dtype=np.float32)
    empty_weight[0, 0] = eos_coeff

    # dense target classes (class 0 = background for unmatched queries) + matched point gather
    target_classes = np.zeros((B, Q), dtype=np.int32)
    pred_points_np = np.asarray(pred_points)
    src_pts_list, tgt_pts_list = [], []
    for b, (src, tgt) in enumerate(indices):
        labels_b = np.asarray(targets[b]['labels'])
        points_b = np.asarray(targets[b]['point'])
        target_classes[b, src] = labels_b[tgt]
        src_pts_list.append(pred_points_np[b, src])
        tgt_pts_list.append(points_b[tgt])

    src_pts = np.concatenate(src_pts_list, axis=0).astype(np.float32).reshape(-1)   # [2N]
    tgt_pts = np.concatenate(tgt_pts_list, axis=0).astype(np.float32).reshape(-1)   # [2N]

    # fixed-size, lane-dense point buffers (zero padding contributes 0 to the SSE)
    src_pad = np.zeros((1, p_pad), dtype=np.float32)
    tgt_pad = np.zeros((1, p_pad), dtype=np.float32)
    src_pad[0, :src_pts.shape[0]] = src_pts
    tgt_pad[0, :tgt_pts.shape[0]] = tgt_pts

    # lane-dense target classes
    tc_pad = np.zeros((1, n_pad), dtype=np.int32)
    tc_pad[0, :BQ] = target_classes.reshape(-1)

    # logits re-layout: [B, Q, C] -> [C, B*Q] (queries on the 128-lane axis), zero-pad lanes.
    # Keep the model's native dtype; the single f32 cast happens inside the kernel.
    logits_cn = jnp.transpose(pred_logits.reshape(BQ, C))
    logits_cn = jnp.pad(logits_cn, ((0, 0), (0, n_pad - BQ)))

    # num_points (world_size == 1, clamp min 1)
    # TODO(synk): torch.distributed all_reduce of num_points skipped (single-device script).
    num_points = float(sum(len(t['labels']) for t in targets))
    num_boxes = max(num_points / 1.0, 1.0)

    loss_ce, loss_pt = _run_loss_kernel(
        logits_cn,
        jnp.asarray(tc_pad),
        jnp.asarray(empty_weight),
        jnp.asarray(src_pad),
        jnp.asarray(tgt_pad),
        jnp.full((1, 1), 1.0 / num_boxes, jnp.float32),
        BQ)
    return {'loss_ce': loss_ce, 'loss_point': loss_pt}


# pure-JAX reference for a sanity check
def _reference(pred_logits, target_classes, empty_weight, src_pts, tgt_pts, num_boxes):
    logp = jax.nn.log_softmax(pred_logits.astype(jnp.float32), axis=-1)
    nll = -jnp.take_along_axis(logp, target_classes[..., None].astype(jnp.int32), axis=-1)[..., 0]
    w = empty_weight[target_classes]
    loss_ce = jnp.sum(w * nll) / jnp.sum(w)
    loss_pt = jnp.sum((src_pts - tgt_pts) ** 2) / num_boxes
    return loss_ce, loss_pt


if __name__ == "__main__":
    key = jax.random.PRNGKey(0)
    B, Q, C = 2, 16, 4          # batch, num_queries, num_classes
    eos_coeff = 0.5
    n_targets = [5, 3]

    k1, k2, k3, k4 = jax.random.split(key, 4)
    # model-native bf16 logits (no wrapper pre-cast; kernel casts once internally)
    pred_logits = jax.random.normal(k1, (B, Q, C), dtype=jnp.float32).astype(jnp.bfloat16)
    pred_points = jax.random.uniform(k2, (B, Q, 2), dtype=jnp.float32)

    targets = []
    tk = k3
    for b in range(B):
        tk, ka, kb = jax.random.split(tk, 3)
        labels = jax.random.randint(ka, (n_targets[b],), 1, C)      # foreground classes 1..C-1
        points = jax.random.uniform(kb, (n_targets[b], 2), dtype=jnp.float32)
        targets.append({'labels': np.asarray(labels), 'point': np.asarray(points)})

    outputs = {'pred_logits': pred_logits, 'pred_points': pred_points}
    losses = p2p_criterion_forward(outputs, targets, simple_matcher,
                                   eos_coeff=eos_coeff, num_classes=C)
    jax.block_until_ready(losses)

    # sanity check against a pure-JAX reference (same bf16 inputs, f32 math)
    indices = simple_matcher({'pred_logits': np.asarray(pred_points),   # matcher only uses points
                              'pred_points': np.asarray(pred_points)}, targets)
    ew = np.ones((C,), dtype=np.float32); ew[0] = eos_coeff
    tc = np.zeros((B, Q), dtype=np.int32)
    sp, tp = [], []
    for b, (src, tgt) in enumerate(indices):
        tc[b, src] = np.asarray(targets[b]['labels'])[tgt]
        sp.append(np.asarray(pred_points)[b, src]); tp.append(np.asarray(targets[b]['point'])[tgt])
    num_boxes = max(float(sum(n_targets)), 1.0)
    ref_ce, ref_pt = _reference(pred_logits, jnp.asarray(tc), jnp.asarray(ew),
                                jnp.asarray(np.concatenate(sp)), jnp.asarray(np.concatenate(tp)),
                                num_boxes)
    np.testing.assert_allclose(np.asarray(losses['loss_ce']), np.asarray(ref_ce), rtol=1e-4, atol=1e-5)
    np.testing.assert_allclose(np.asarray(losses['loss_point']), np.asarray(ref_pt), rtol=1e-4, atol=1e-5)

    print("KERNEL_OK")
</pallas_src>

<mosaic_0001>
module attributes {stable_mosaic.version = 11 : i64} {
  func.func @_p2p_loss_kernel(%arg0: memref<4x128xbf16, #tpu.memory_space<vmem>>, %arg1: memref<1x128xi32, #tpu.memory_space<vmem>>, %arg2: memref<4x1xf32, #tpu.memory_space<vmem>>, %arg3: memref<1x128xf32, #tpu.memory_space<vmem>>, %arg4: memref<1x128xf32, #tpu.memory_space<vmem>>, %arg5: memref<1x1xf32, #tpu.memory_space<smem>>, %arg6: memref<1x1xf32, #tpu.memory_space<vmem>>, %arg7: memref<1x1xf32, #tpu.memory_space<vmem>>) attributes {dimension_semantics = [], scalar_prefetch = 0 : i64, scratch_operands = 0 : i64, tpu.core_type = #tpu.core_type<tc>} {
    %c0 = arith.constant 0 : index
    %c0_0 = arith.constant 0 : index
    %0 = vector.load %arg0[%c0, %c0_0] : memref<4x128xbf16, #tpu.memory_space<vmem>>, vector<4x128xbf16>
    %1 = arith.extf %0 : vector<4x128xbf16> to vector<4x128xf32>
    %c0_1 = arith.constant 0 : index
    %c0_2 = arith.constant 0 : index
    %2 = vector.load %arg1[%c0_1, %c0_2] : memref<1x128xi32, #tpu.memory_space<vmem>>, vector<1x128xi32>
    %c0_3 = arith.constant 0 : index
    %c0_4 = arith.constant 0 : index
    %3 = vector.load %arg2[%c0_3, %c0_4] : memref<4x1xf32, #tpu.memory_space<vmem>>, vector<4x1xf32>
    %4 = tpu.iota {dimensions = array<i32: 0>} : vector<4x128xi32>
    %5 = tpu.iota {dimensions = array<i32: 1>} : vector<1x128xi32>
    %c32_i32 = arith.constant 32 : i32
    %6 = vector.broadcast %c32_i32 : i32 to vector<1x128xi32>
    %7 = arith.cmpi slt, %5, %6 : vector<1x128xi32>
    %8 = vector.broadcast %2 : vector<1x128xi32> to vector<4x128xi32>
    %9 = arith.cmpi eq, %4, %8 : vector<4x128xi32>
    %10 = vector.broadcast %7 : vector<1x128xi1> to vector<4x128xi1>
    %11 = arith.andi %9, %10 : vector<4x128xi1>
    %cst = arith.constant dense<0xFF800000> : vector<128xf32>
    %12 = vector.multi_reduction <maximumf>, %1, %cst [0] : vector<4x128xf32> to vector<128xf32>
    %13 = vector.shape_cast %12 : vector<128xf32> to vector<1x128xf32>
    %14 = vector.broadcast %13 : vector<1x128xf32> to vector<4x128xf32>
    %15 = arith.subf %1, %14 : vector<4x128xf32>
    %16 = math.exp %15 : vector<4x128xf32>
    %cst_5 = arith.constant dense<0.000000e+00> : vector<128xf32>
    %17 = vector.multi_reduction <add>, %16, %cst_5 [0] : vector<4x128xf32> to vector<128xf32>
    %18 = vector.shape_cast %17 : vector<128xf32> to vector<1x128xf32>
    %19 = math.log %18 : vector<1x128xf32>
    %20 = arith.addf %13, %19 : vector<1x128xf32>
    %cst_6 = arith.constant 0.000000e+00 : f32
    %21 = vector.shape_cast %3 : vector<4x1xf32> to vector<4x1xf32>
    %22 = vector.broadcast %21 : vector<4x1xf32> to vector<4x128xf32>
    %23 = vector.broadcast %cst_6 : f32 to vector<4x128xf32>
    %24 = arith.select %11, %22, %23 : vector<4x128xi1>, vector<4x128xf32>
    %25 = vector.broadcast %20 : vector<1x128xf32> to vector<4x128xf32>
    %26 = arith.subf %25, %1 : vector<4x128xf32>
    %27 = arith.mulf %24, %26 : vector<4x128xf32>
    %28 = vector.shape_cast %27 : vector<4x128xf32> to vector<1x4x128xf32>
    %cst_7 = arith.constant dense<0.000000e+00> : vector<1xf32>
    %29 = vector.multi_reduction <add>, %28, %cst_7 [1, 2] : vector<1x4x128xf32> to vector<1xf32>
    %30 = vector.shape_cast %29 : vector<1xf32> to vector<1x1x1xf32>
    %31 = vector.extract %30[0, 0, 0] : f32 from vector<1x1x1xf32>
    %32 = vector.shape_cast %24 : vector<4x128xf32> to vector<1x4x128xf32>
    %cst_8 = arith.constant dense<0.000000e+00> : vector<1xf32>
    %33 = vector.multi_reduction <add>, %32, %cst_8 [1, 2] : vector<1x4x128xf32> to vector<1xf32>
    %34 = vector.shape_cast %33 : vector<1xf32> to vector<1x1x1xf32>
    %35 = vector.extract %34[0, 0, 0] : f32 from vector<1x1x1xf32>
    %36 = vector.broadcast %31 : f32 to vector<1x1xf32>
    %37 = vector.broadcast %35 : f32 to vector<1x1xf32>
    %38 = arith.divf %36, %37 : vector<1x1xf32>
    %c0_9 = arith.constant 0 : index
    %c0_10 = arith.constant 0 : index
    %39 = vector.load %arg6[%c0_9, %c0_10] : memref<1x1xf32, #tpu.memory_space<vmem>>, vector<1x1xf32>
    tpu.vector_store %arg6[%c0_9, %c0_10], %38 {strides = array<i32>} : memref<1x1xf32, #tpu.memory_space<vmem>>, vector<1x1xf32>,
    %c0_11 = arith.constant 0 : index
    %c0_12 = arith.constant 0 : index
    %40 = vector.load %arg3[%c0_11, %c0_12] : memref<1x128xf32, #tpu.memory_space<vmem>>, vector<1x128xf32>
    %c0_13 = arith.constant 0 : index
    %c0_14 = arith.constant 0 : index
    %41 = vector.load %arg4[%c0_13, %c0_14] : memref<1x128xf32, #tpu.memory_space<vmem>>, vector<1x128xf32>
    %42 = arith.subf %40, %41 : vector<1x128xf32>
    %43 = arith.mulf %42, %42 : vector<1x128xf32>
    %44 = vector.shape_cast %43 : vector<1x128xf32> to vector<1x1x128xf32>
    %cst_15 = arith.constant dense<0.000000e+00> : vector<1xf32>
    %45 = vector.multi_reduction <add>, %44, %cst_15 [1, 2] : vector<1x1x128xf32> to vector<1xf32>
    %46 = vector.shape_cast %45 : vector<1xf32> to vector<1x1x1xf32>
    %47 = vector.extract %46[0, 0, 0] : f32 from vector<1x1x1xf32>
    %48 = vector.broadcast %47 : f32 to vector<1x1xf32>
    %c0_16 = arith.constant 0 : index
    %c0_17 = arith.constant 0 : index
    %49 = memref.load %arg5[%c0_16, %c0_17] : memref<1x1xf32, #tpu.memory_space<smem>>
    %50 = vector.broadcast %49 : f32 to vector<1x1xf32>
    %51 = arith.mulf %48, %50 : vector<1x1xf32>
    %c0_18 = arith.constant 0 : index
    %c0_19 = arith.constant 0 : index
    %52 = vector.load %arg7[%c0_18, %c0_19] : memref<1x1xf32, #tpu.memory_space<vmem>>, vector<1x1xf32>
    tpu.vector_store %arg7[%c0_18, %c0_19], %51 {strides = array<i32>} : memref<1x1xf32, #tpu.memory_space<vmem>>, vector<1x1xf32>,
    return
  }
}

</mosaic_0001>

<llo_original>
// kernel: tpu_custom_call.1
$region0: #{tpu_custom_call.1}
  #allocation0 [shape = 'u32[]', space=smem, size = 0x4, offset = 0x4, fixed_abs, tag = 'smem constant byte address 0x4 - core index']
  #allocation1 [shape = 'u32[144,128]{1,0:T(1,128)}', space=vmem, size = 0x12000, scoped, tag = 'internal scratch']
  #allocation2 [shape = 'f32[1,1]{1,0:T(1,128)S(6)}', space=smem, size = 0x200, scoped, tag = 'scoped memory for tpu_custom_call.1']
  %s0 = inlined_call_operand.vmem [shape: bf16[4,128], index: 0, kind: input, shape index: {}]
  %s1 = inlined_call_operand.vmem [shape: s32[1,128], index: 1, kind: input, shape index: {}]
  %s2 = inlined_call_operand.vmem [shape: f32[4,1], index: 2, kind: input, shape index: {}]
  %s3 = inlined_call_operand.vmem [shape: f32[1,128], index: 3, kind: input, shape index: {}]
  %s4 = inlined_call_operand.vmem [shape: f32[1,128], index: 4, kind: input, shape index: {}]
  %s5 = inlined_call_operand.<no memory space> [shape: f32[1,1], index: 5, kind: input, shape index: {}]
  %s6 = inlined_call_operand.hbm [shape: f32[1,1], index: 6, kind: output, shape index: {0}]
  %s7 = inlined_call_operand.hbm [shape: f32[1,1], index: 7, kind: output, shape index: {1}]
  %8 = xla_tuple %s6, %s7
  %s9 = sld [smem:[#allocation0]]
  $region42: #{tpu_custom_call.1} parent=0
    _
  %s11 = ssub.s32 1, %s9
  %s12 = scalar_select 0, %s11, %s9
  %13 = sst [smem:[#allocation2]] %s5
  $region1: #{tpu_custom_call.1} parent=0
    #allocation3 [shape = 'u8[512]{0}', space=vmem, size = 0x400, scoped, tag = 'output window, operand 0, single buffered']
    #allocation4 [shape = 's32[1]{0}', space=sflag, size = 0x4, scoped, tag = 'scoped memory for tpu_custom_call.1']
    #allocation5 [shape = 'u8[512]{0}', space=vmem, size = 0x400, scoped, tag = 'output window, operand 1, single buffered']
    #allocation6 [shape = 's32[1]{0}', space=sflag, size = 0x4, scoped, tag = 'scoped memory for tpu_custom_call.1']
    %14 = vsyncpa [#allocation4], 0
    %15 = vsyncpa [#allocation6], 0
    // Predicated region
    $region2: #{tpu_custom_call.1} parent=1 // pred_check
      _
    $region3: #{tpu_custom_call.1} parent=1 // pred_check_branch
      %17 = sbr.rel (0) target = $region5
    $region4: #{tpu_custom_call.1} parent=1 // pred_region
      _
    $region5: #{tpu_custom_call.1} parent=1 // pred_fallthru
      _
    // Predicated region
    $region6: #{tpu_custom_call.1} parent=1 // pred_check
      _
    $region7: #{tpu_custom_call.1} parent=1 // pred_check_branch
      %19 = sbr.rel (0) target = $region9
    $region8: #{tpu_custom_call.1} parent=1 // pred_region
      _
    $region9: #{tpu_custom_call.1} parent=1 // pred_fallthru
      _
    // Predicated region
    $region10: #{tpu_custom_call.1} parent=1 // pred_check
      _
    $region11: #{tpu_custom_call.1} parent=1 // pred_check_branch
      %21 = sbr.rel (0) target = $region13
    $region12: #{tpu_custom_call.1} parent=1 // pred_region
      _
    $region13: #{tpu_custom_call.1} parent=1 // pred_fallthru
      _
    // Predicated region
    $region14: #{tpu_custom_call.1} parent=1 // pred_check
      _
    $region15: #{tpu_custom_call.1} parent=1 // pred_check_branch
      %23 = sbr.rel (0) target = $region17
    $region16: #{tpu_custom_call.1} parent=1 // pred_region
      _
    $region17: #{tpu_custom_call.1} parent=1 // pred_fallthru
      _
    // Predicated region
    $region18: #{tpu_custom_call.1} parent=1 // pred_check
      _
    $region19: #{tpu_custom_call.1} parent=1 // pred_check_branch
      %25 = sbr.rel (0) target = $region21
    $region20: #{tpu_custom_call.1} parent=1 // pred_region
      _
    $region21: #{tpu_custom_call.1} parent=1 // pred_fallthru
      _
    // Predicated region
    $region22: #{tpu_custom_call.1} parent=1 // pred_check
      _
    $region23: #{tpu_custom_call.1} parent=1 // pred_check_branch
      %27 = sbr.rel (0) target = $region25
    $region24: #{tpu_custom_call.1} parent=1 // pred_region
      _
    $region25: #{tpu_custom_call.1} parent=1 // pred_fallthru
      _
    %v28 = vld [vmem:[%s0] sm:$0x3]
    %v29 = vunpack.c.l.bf16 %v28
    %v30 = vld [vmem:[%s1] sm:$0x1]
    %v31 = vld [vmem:[%s2] sm:$0xf]
    %v32 = vlaneseq
    %v33 = vshrl.u32 %v32, 7
    %v34 = vlaneseq
    %v35 = vand.u32 %v34, 127
    %vm36 = vcmp.lt.s32.totalorder %v35, 32
    %v37 = vlaneseq
    %v38 = vshrl.u32 %v37, 7
    %v39 = vsub.s32 0, %v38
    %v40 = vrot.slane %v30, %v39
    %vm41 = vcmp.eq.s32.totalorder %v33, %v40
    %v42 = vsel %vm36, 1, 0
    %vm43 = vcmp.eq.s32.totalorder %v42, 1
    %vm44 = vmand %vm41, %vm43
    %vm45 = vcmask 1043456
    %v46 = vsel %vm45, %v29, -inf
    %v47 = vrot.slane %v46, 4
    %v48 = vmax.f32 %v46, %v47
    %v49 = vrot.slane %v48, 2
    %v50 = vmax.f32 %v48, %v49
    %v51 = vrot.slane %v50, 1
    %v52 = vmax.f32 %v50, %v51
    %v53 = vsub.f32 %v29, %v52
    %v54 = vmul.f32 %v53, 1.442695
    %v55 = vpow.pop %v54
    %v56 = vsel %vm45, %v55, 0.0
    %v57 = vrot.slane %v56, 4
    %v58 = vadd.f32 %v56, %v57
    %v59 = vrot.slane %v58, 2
    %v60 = vadd.f32 %v58, %v59
    %v61 = vrot.slane %v60, 1
    %v62 = vadd.f32 %v60, %v61
    %v63 = vlog2.pop %v62
    %v64 = vmul.f32 %v63, 0.6931472
    %v65 = vadd.f32 %v52, %v64
    %67 = vset.pattern.permute.xlu0 0
    %68 = vperm.xlu0 %67, %v31
    %v69 = vpop.permute.xlu0 %68
    %v71 = vsel %vm44, %v69, 0.0
    %v72 = vsub.f32 %v65, %v29
    %v73 = vmul.f32 %v71, %v72
    %v74 = vsel %vm45, %v73, 0.0
    %75 = vadd.xlane.f32.xlu0 %v74
    %v76 = vpop.xlane.xlu0 %75
    %v77 = vrot.slane %v76, 4
    %v78 = vadd.f32 %v76, %v77
    %v79 = vrot.slane %v78, 2
    %v80 = vadd.f32 %v78, %v79
    %v81 = vrot.slane %v80, 1
    %v82 = vadd.f32 %v80, %v81
    %s83 = vtos %v82
    %v84 = vsel %vm45, %v71, 0.0
    %85 = vadd.xlane.f32.xlu0 %v84
    %v86 = vpop.xlane.xlu0 %85
    %v87 = vrot.slane %v86, 4
    %v88 = vadd.f32 %v86, %v87
    %v89 = vrot.slane %v88, 2
    %v90 = vadd.f32 %v88, %v89
    %v91 = vrot.slane %v90, 1
    %v92 = vadd.f32 %v90, %v91
    %s93 = vtos %v92
    %v94 = vstv %s83
    %v95 = vstv %s93
    %v96 = vrcp.pop %v95
    %v97 = vmul.f32 %v94, %v96
    %vm98 = vcmask 0
    %99 = vst.msk [vmem:[#allocation3] sm:$0x1] %vm98, %v97
    %v100 = vld [vmem:[%s3] sm:$0x1]
    %v101 = vld [vmem:[%s4] sm:$0x1]
    %v102 = vsub.f32 %v100, %v101
    %v103 = vmul.f32 %v102, %v102
    %vm104 = vcmask 1040384
    %v105 = vsel %vm104, %v103, 0.0
    %106 = vadd.xlane.f32.xlu0 %v105
    %v107 = vpop.xlane.xlu0 %106
    %v108 = vrot.slane %v107, 4
    %v109 = vadd.f32 %v107, %v108
    %v110 = vrot.slane %v109, 2
    %v111 = vadd.f32 %v109, %v110
    %v112 = vrot.slane %v111, 1
    %v113 = vadd.f32 %v111, %v112
    %s114 = vtos %v113
    %v115 = vstv %s114
    %s116 = sld [smem:[#allocation2]]
    %v117 = vstv %s116
    %v118 = vmul.f32 %v115, %v117
    %119 = vst.msk [vmem:[#allocation5] sm:$0x1] %vm98, %v118
    // Predicated region
    $region26: #{tpu_custom_call.1} parent=1 // pred_check
      _
    $region27: #{tpu_custom_call.1} parent=1 // pred_check_branch
      %121 = sbr.rel (0) target = $region29
    $region28: #{tpu_custom_call.1} parent=1 // pred_region
      %s123 = ssub.s32 16, 16
      %124 = vsyncadd [#allocation4], %s123
      %s126 = sshll.u32 [#allocation3], 4
      %s127 = int_to_ptr.vmem [resolvable:$true] %s126
      %129 = dma.vmem_to_hbm [thread:$0]  %s127, 16, %s6, [#allocation4]
    $region29: #{tpu_custom_call.1} parent=1 // pred_fallthru
      _
    // Predicated region
    $region30: #{tpu_custom_call.1} parent=1 // pred_check
      _
    $region31: #{tpu_custom_call.1} parent=1 // pred_check_branch
      %131 = sbr.rel (0) target = $region33
    $region32: #{tpu_custom_call.1} parent=1 // pred_region
      %s133 = ssub.s32 16, 16
      %134 = vsyncadd [#allocation6], %s133
      %s136 = sshll.u32 [#allocation5], 4
      %s137 = int_to_ptr.vmem [resolvable:$true] %s136
      %139 = dma.vmem_to_hbm [thread:$0]  %s137, 16, %s7, [#allocation6]
    $region33: #{tpu_custom_call.1} parent=1 // pred_fallthru
      _
    // Predicated region
    $region34: #{tpu_custom_call.1} parent=1 // pred_check
      _
    $region35: #{tpu_custom_call.1} parent=1 // pred_check_branch
      %141 = sbr.rel (0) target = $region37
    $region36: #{tpu_custom_call.1} parent=1 // pred_region
      %142 = dma.done [#allocation4], 16
    $region37: #{tpu_custom_call.1} parent=1 // pred_fallthru
      _
    // Predicated region
    $region38: #{tpu_custom_call.1} parent=1 // pred_check
      _
    $region39: #{tpu_custom_call.1} parent=1 // pred_check_branch
      %144 = sbr.rel (0) target = $region41
    $region40: #{tpu_custom_call.1} parent=1 // pred_region
      %145 = dma.done [#allocation6], 16
    $region41: #{tpu_custom_call.1} parent=1 // pred_fallthru
      _
    %146 = vsyncpa [#allocation4], 1
    %147 = vsyncpa [#allocation6], 1

</llo_original>
